<compile_context>
chip_gen: v7x
topology: tpu7x:2x2x1
jax: 0.10.0
libtpu: 0.0.40
codegen_flags: <defaults>
</compile_context>

<pallas_src>
import functools

import jax
import jax.numpy as jnp
from jax.experimental import pallas as pl
from jax.experimental.pallas import tpu as pltpu


def _round_up(x, m):
    return ((x + m - 1) // m) * m


def receiver4_kernel(x_ref, w34_ref, b34_ref, w5_ref, b5_ref, o_ref):
    x = x_ref[...]

    # Fused lin3+lin4 (relu between them is dead code in the original forward),
    # then relu.
    h = jnp.dot(x, w34_ref[...], preferred_element_type=jnp.float32) + b34_ref[...]
    h = jnp.maximum(h, 0.0)

    # lin5
    z = jnp.dot(h, w5_ref[...], preferred_element_type=jnp.float32) + b5_ref[...]

    # softmax over dim=1 (last dim), numerically stable, EXACT normalization
    # (approx reciprocal previously exceeded the 1e-4 tolerance).
    z = z - jnp.max(z, axis=-1, keepdims=True)
    e = jnp.exp(z)
    o_ref[...] = e / jnp.sum(e, axis=-1, keepdims=True)


@functools.partial(jax.jit, static_argnames=("tile_b_max",))
def receiver_4_forward(x, w3, b3, w4, b4, w5, b5, tile_b_max=8192):
    """x: (B, 2*num_chan) f32; weights stored (in, out); biases (1, out)."""
    batch, in_feat = x.shape
    num_sym = w5.shape[1]

    # Algebraic fusion of lin3 + lin4 (relu(lin3) is dead code).
    w34 = jnp.dot(w3, w4, precision=jax.lax.Precision.HIGHEST)          # (in_feat, num_sym)
    b34 = jnp.dot(b3, w4, precision=jax.lax.Precision.HIGHEST) + b4     # (1, num_sym)

    # Batch tiling:
    #  * large tiles amortize the ~0.35us/grid-step overhead and per-step DMA
    #    setup (default up to 8192 rows, ~16-17 MiB lane-padded VMEM footprint
    #    double-buffered -> fits every chip's scoped VMEM),
    #  * cap at ceil(batch/2) so the "parallel" batch axis has >=2 grid steps
    #    and both v7x TensorCores get work,
    #  * tile must be a multiple of 8 (sublane constraint).
    tile_b = max(8, min(tile_b_max, _round_up(pl.cdiv(batch, 2), 8)))
    grid = (pl.cdiv(batch, tile_b),)   # ragged last block handled by Pallas

    out = pl.pallas_call(
        receiver4_kernel,
        out_shape=jax.ShapeDtypeStruct((batch, num_sym), jnp.float32),
        grid=grid,
        in_specs=[
            pl.BlockSpec((tile_b, in_feat), lambda i: (i, 0)),     # x: tiled over batch
            pl.BlockSpec((in_feat, num_sym), lambda i: (0, 0)),    # fused W34 (VMEM-resident)
            pl.BlockSpec((1, num_sym), lambda i: (0, 0)),          # fused b34 (resident)
            pl.BlockSpec((num_sym, num_sym), lambda i: (0, 0)),    # w5 (resident)
            pl.BlockSpec((1, num_sym), lambda i: (0, 0)),          # b5 (resident)
        ],
        out_specs=pl.BlockSpec((tile_b, num_sym), lambda i: (i, 0)),
        compiler_params=pltpu.CompilerParams(
            dimension_semantics=("parallel",),        # shards batch tiles across v7x's 2 TCs
            vmem_limit_bytes=48 * 1024 * 1024,        # headroom for 8K-row tiles, safe on v7x (64 MiB)
        ),
    )(x, w34, b34, w5, b5)
    return out
    # TODO(synk): lane-dense packing of the (tile_b, 16) output (and 8-wide
    # input) into 128-wide rows would remove masked vst.msk stores and the
    # 8-16x lane padding of the VMEM buffers, but needs an in-kernel
    # sublane->lane relayout ((tile_b,16)->(tile_b//8,128) reshape) that Mosaic
    # may reject; kept the guaranteed-lowerable layout.


def _init_linear(key, fan_in, fan_out):
    """PyTorch-style uniform(-1/sqrt(fan_in), 1/sqrt(fan_in)) init.

    Weight returned as (fan_in, fan_out) (transposed vs. torch), bias (1, fan_out)."""
    kw, kb = jax.random.split(key)
    bound = 1.0 / jnp.sqrt(jnp.float32(fan_in))
    w = jax.random.uniform(kw, (fan_in, fan_out), jnp.float32, -bound, bound)
    b = jax.random.uniform(kb, (1, fan_out), jnp.float32, -bound, bound)
    return w, b


if __name__ == "__main__":
    # Small shapes consistent with the module:
    #   num_sym=16, num_chan=4 (-> input features = 8), hidden_neurons=32, batch=8
    num_sym, num_chan, hidden = 16, 4, 32
    batch = 8

    key = jax.random.PRNGKey(0)
    k_x, k3, k4, k5 = jax.random.split(key, 4)

    x = jax.random.normal(k_x, (batch, num_chan * 2), jnp.float32)
    w3, b3 = _init_linear(k3, num_chan * 2, hidden)   # lin3
    w4, b4 = _init_linear(k4, hidden, num_sym)        # lin4
    w5, b5 = _init_linear(k5, num_sym, num_sym)       # lin5

    out = jax.block_until_ready(receiver_4_forward(x, w3, b3, w4, b4, w5, b5))

    # Reference: the original (unfused) forward of the PyTorch module, at full
    # f32 matmul precision.
    hp = jax.lax.Precision.HIGHEST
    h = jnp.dot(x, w3, precision=hp) + b3                      # lin3; relu(h) is dead code
    h2 = jnp.maximum(jnp.dot(h, w4, precision=hp) + b4, 0.0)   # relu(lin4(pre-relu h))
    z = jnp.dot(h2, w5, precision=hp) + b5                     # lin5
    ref = jax.nn.softmax(z, axis=1)

    assert out.shape == (batch, num_sym)
    err = float(jnp.max(jnp.abs(out - ref)))
    assert jnp.allclose(out, ref, atol=1e-4, rtol=1e-4), err

    print("KERNEL_OK")
</pallas_src>

<mosaic_0001>
module attributes {stable_mosaic.version = 11 : i64} {
  func.func @receiver4_kernel(%arg0: i32, %arg1: memref<8x8xf32, #tpu.memory_space<vmem>>, %arg2: memref<8x16xf32, #tpu.memory_space<vmem>>, %arg3: memref<1x16xf32, #tpu.memory_space<vmem>>, %arg4: memref<16x16xf32, #tpu.memory_space<vmem>>, %arg5: memref<1x16xf32, #tpu.memory_space<vmem>>, %arg6: memref<8x16xf32, #tpu.memory_space<vmem>>) attributes {dimension_semantics = [#tpu.dimension_semantics<parallel>], iteration_bounds = array<i64: 1>, scalar_prefetch = 0 : i64, scratch_operands = 0 : i64, tpu.core_type = #tpu.core_type<tc>, window_params = [{transform_indices = @transform_0, window_bounds = array<i64: 8, 8>}, {pipeline_mode = #tpu.pipeline_mode<synchronous>, transform_indices = @transform_1, window_bounds = array<i64: 8, 16>}, {pipeline_mode = #tpu.pipeline_mode<synchronous>, transform_indices = @transform_2, window_bounds = array<i64: 1, 16>}, {pipeline_mode = #tpu.pipeline_mode<synchronous>, transform_indices = @transform_3, window_bounds = array<i64: 16, 16>}, {pipeline_mode = #tpu.pipeline_mode<synchronous>, transform_indices = @transform_4, window_bounds = array<i64: 1, 16>}, {transform_indices = @transform_5, window_bounds = array<i64: 8, 16>}]} {
    %c0 = arith.constant 0 : index
    %c0_0 = arith.constant 0 : index
    %0 = vector.load %arg1[%c0, %c0_0] : memref<8x8xf32, #tpu.memory_space<vmem>>, vector<8x8xf32>
    %c0_1 = arith.constant 0 : index
    %c0_2 = arith.constant 0 : index
    %1 = vector.load %arg2[%c0_1, %c0_2] : memref<8x16xf32, #tpu.memory_space<vmem>>, vector<8x16xf32>
    %cst = arith.constant dense<0.000000e+00> : vector<8x16xf32>
    %2 = tpu.matmul %0, %1, %cst {dimension_numbers = #tpu.dot_dimension_numbers<[1], [0], [0], [1], [0, 0, 1, 1], [], []>} : vector<8x8xf32>, vector<8x16xf32>, vector<8x16xf32> -> vector<8x16xf32>
    %c0_3 = arith.constant 0 : index
    %c0_4 = arith.constant 0 : index
    %3 = vector.load %arg3[%c0_3, %c0_4] : memref<1x16xf32, #tpu.memory_space<vmem>>, vector<1x16xf32>
    %4 = vector.broadcast %3 : vector<1x16xf32> to vector<8x16xf32>
    %5 = arith.addf %2, %4 : vector<8x16xf32>
    %cst_5 = arith.constant 0.000000e+00 : f32
    %6 = vector.broadcast %cst_5 : f32 to vector<8x16xf32>
    %7 = arith.maximumf %5, %6 : vector<8x16xf32>
    %c0_6 = arith.constant 0 : index
    %c0_7 = arith.constant 0 : index
    %8 = vector.load %arg4[%c0_6, %c0_7] : memref<16x16xf32, #tpu.memory_space<vmem>>, vector<16x16xf32>
    %cst_8 = arith.constant dense<0.000000e+00> : vector<8x16xf32>
    %9 = tpu.matmul %7, %8, %cst_8 {dimension_numbers = #tpu.dot_dimension_numbers<[1], [0], [0], [1], [0, 0, 1, 1], [], []>} : vector<8x16xf32>, vector<16x16xf32>, vector<8x16xf32> -> vector<8x16xf32>
    %c0_9 = arith.constant 0 : index
    %c0_10 = arith.constant 0 : index
    %10 = vector.load %arg5[%c0_9, %c0_10] : memref<1x16xf32, #tpu.memory_space<vmem>>, vector<1x16xf32>
    %11 = vector.broadcast %10 : vector<1x16xf32> to vector<8x16xf32>
    %12 = arith.addf %9, %11 : vector<8x16xf32>
    %cst_11 = arith.constant dense<0xFF800000> : vector<8xf32>
    %13 = vector.multi_reduction <maximumf>, %12, %cst_11 [1] : vector<8x16xf32> to vector<8xf32>
    %14 = vector.shape_cast %13 : vector<8xf32> to vector<8x1xf32>
    %15 = vector.broadcast %14 : vector<8x1xf32> to vector<8x16xf32>
    %16 = arith.subf %12, %15 : vector<8x16xf32>
    %17 = math.exp %16 : vector<8x16xf32>
    %cst_12 = arith.constant dense<0.000000e+00> : vector<8xf32>
    %18 = vector.multi_reduction <add>, %17, %cst_12 [1] : vector<8x16xf32> to vector<8xf32>
    %19 = vector.shape_cast %18 : vector<8xf32> to vector<8x1xf32>
    %20 = vector.broadcast %19 : vector<8x1xf32> to vector<8x16xf32>
    %21 = arith.divf %17, %20 : vector<8x16xf32>
    %c0_13 = arith.constant 0 : index
    %c0_14 = arith.constant 0 : index
    %22 = vector.load %arg6[%c0_13, %c0_14] : memref<8x16xf32, #tpu.memory_space<vmem>>, vector<8x16xf32>
    tpu.vector_store %arg6[%c0_13, %c0_14], %21 {strides = array<i32>} : memref<8x16xf32, #tpu.memory_space<vmem>>, vector<8x16xf32>,
    return
  }
  func.func @transform_0(%arg0: i32) -> (i32, i32) {
    %c0_i32 = arith.constant 0 : i32
    %c0_i32_0 = arith.constant 0 : i32
    return %arg0, %c0_i32 : i32, i32
  }
  func.func @transform_1(%arg0: i32) -> (i32, i32) {
    %c0_i32 = arith.constant 0 : i32
    %c0_i32_0 = arith.constant 0 : i32
    %c0_i32_1 = arith.constant 0 : i32
    return %c0_i32, %c0_i32_0 : i32, i32
  }
  func.func @transform_2(%arg0: i32) -> (i32, i32) {
    %c0_i32 = arith.constant 0 : i32
    %c0_i32_0 = arith.constant 0 : i32
    %c0_i32_1 = arith.constant 0 : i32
    return %c0_i32, %c0_i32_0 : i32, i32
  }
  func.func @transform_3(%arg0: i32) -> (i32, i32) {
    %c0_i32 = arith.constant 0 : i32
    %c0_i32_0 = arith.constant 0 : i32
    %c0_i32_1 = arith.constant 0 : i32
    return %c0_i32, %c0_i32_0 : i32, i32
  }
  func.func @transform_4(%arg0: i32) -> (i32, i32) {
    %c0_i32 = arith.constant 0 : i32
    %c0_i32_0 = arith.constant 0 : i32
    %c0_i32_1 = arith.constant 0 : i32
    return %c0_i32, %c0_i32_0 : i32, i32
  }
  func.func @transform_5(%arg0: i32) -> (i32, i32) {
    %c0_i32 = arith.constant 0 : i32
    %c0_i32_0 = arith.constant 0 : i32
    return %arg0, %c0_i32 : i32, i32
  }
}

</mosaic_0001>

<llo_original>
// kernel: receiver_4_forward.1
$region0: #{receiver_4_forward.1}
  #allocation0 [shape = 'u32[]', space=smem, size = 0x4, offset = 0x4, fixed_abs, tag = 'smem constant byte address 0x4 - core index']
  #allocation1 [shape = 'u32[144,128]{1,0:T(1,128)}', space=vmem, size = 0x12000, scoped, tag = 'internal scratch']
  %s0 = inlined_call_operand.vmem [shape: f32[8,8], index: 0, kind: input, shape index: {}]
  %s1 = inlined_call_operand.vmem [shape: f32[8,16], index: 1, kind: input, shape index: {}]
  %s2 = inlined_call_operand.vmem [shape: f32[1,16], index: 2, kind: input, shape index: {}]
  %s3 = inlined_call_operand.vmem [shape: f32[16,16], index: 3, kind: input, shape index: {}]
  %s4 = inlined_call_operand.vmem [shape: f32[1,16], index: 4, kind: input, shape index: {}]
  %s5 = inlined_call_operand.hbm [shape: f32[8,16], index: 5, kind: output, shape index: {}]
  %s6 = sld [smem:[#allocation0]]
  $region30: #{receiver_4_forward.1} parent=0
    _
  %s8 = ssub.s32 1, %s6
  %s9 = scalar_select 0, %s8, %s6
  $region1: #{receiver_4_forward.1} parent=0
    #allocation2 [shape = 'u8[4096]{0}', space=vmem, size = 0x1000, scoped, tag = 'output window, operand 0, single buffered']
    #allocation3 [shape = 's32[1]{0}', space=sflag, size = 0x4, scoped, tag = 'scoped memory for receiver_4_forward.1']
    %10 = vsyncpa [#allocation3], 0
    // Predicated region
    $region2: #{receiver_4_forward.1} parent=1 // pred_check
      _
    $region3: #{receiver_4_forward.1} parent=1 // pred_check_branch
      %12 = sbr.rel (0) target = $region5
    $region4: #{receiver_4_forward.1} parent=1 // pred_region
      _
    $region5: #{receiver_4_forward.1} parent=1 // pred_fallthru
      _
    // Predicated region
    $region6: #{receiver_4_forward.1} parent=1 // pred_check
      _
    $region7: #{receiver_4_forward.1} parent=1 // pred_check_branch
      %14 = sbr.rel (0) target = $region9
    $region8: #{receiver_4_forward.1} parent=1 // pred_region
      _
    $region9: #{receiver_4_forward.1} parent=1 // pred_fallthru
      _
    // Predicated region
    $region10: #{receiver_4_forward.1} parent=1 // pred_check
      _
    $region11: #{receiver_4_forward.1} parent=1 // pred_check_branch
      %16 = sbr.rel (0) target = $region13
    $region12: #{receiver_4_forward.1} parent=1 // pred_region
      _
    $region13: #{receiver_4_forward.1} parent=1 // pred_fallthru
      _
    // Predicated region
    $region14: #{receiver_4_forward.1} parent=1 // pred_check
      _
    $region15: #{receiver_4_forward.1} parent=1 // pred_check_branch
      %18 = sbr.rel (0) target = $region17
    $region16: #{receiver_4_forward.1} parent=1 // pred_region
      _
    $region17: #{receiver_4_forward.1} parent=1 // pred_fallthru
      _
    // Predicated region
    $region18: #{receiver_4_forward.1} parent=1 // pred_check
      _
    $region19: #{receiver_4_forward.1} parent=1 // pred_check_branch
      %20 = sbr.rel (0) target = $region21
    $region20: #{receiver_4_forward.1} parent=1 // pred_region
      _
    $region21: #{receiver_4_forward.1} parent=1 // pred_fallthru
      _
    %v21 = vld [vmem:[%s0] sm:$0xff]
    %v22 = vld [vmem:[%s1] sm:$0xff]
    %v23 = vld [vmem:[%s2] sm:$0x1]
    %v25 = vlaneseq
    %v26 = vshrl.u32 %v25, 7
    %v27 = vsub.s32 0, %v26
    %v28 = vrot.slane %v23, %v27
    %vm30 = vcmask 64512
    %v32 = vsel %vm30, %v21, 0
    %34 = vmatprep.subr.mxu0 0.0
    %35 = vmatpush1.msra.mxu0 %v22
    %36 = vmatprep.subr.mxu0 0.0
    %37 = vmatpush1.msra.mxu0 0.0
    %38 = vmatprep.subr.mxu0 0.0
    %39 = vmatpush1.msra.mxu0 0.0
    %40 = vmatprep.subr.mxu0 0.0
    %41 = vmatpush1.msra.mxu0 0.0
    %42 = vmatprep.subr.mxu0 0.0
    %43 = vmatpush1.msra.mxu0 0.0
    %44 = vmatprep.subr.mxu0 0.0
    %45 = vmatpush1.msra.mxu0 0.0
    %46 = vmatprep.subr.mxu0 0.0
    %47 = vmatpush1.msra.mxu0 0.0
    %48 = vmatprep.subr.mxu0 0.0
    %49 = vmatpush1.msra.mxu0 0.0
    %50 = vmatprep.subr.mxu0 0.0
    %51 = vmatpush1.msra.mxu0 0.0
    %52 = vmatprep.subr.mxu0 0.0
    %53 = vmatpush1.msra.mxu0 0.0
    %54 = vmatprep.subr.mxu0 0.0
    %55 = vmatpush1.msra.mxu0 0.0
    %56 = vmatprep.subr.mxu0 0.0
    %57 = vmatpush1.msra.mxu0 0.0
    %58 = vmatprep.subr.mxu0 0.0
    %59 = vmatpush1.msra.mxu0 0.0
    %60 = vmatprep.subr.mxu0 0.0
    %61 = vmatpush1.msra.mxu0 0.0
    %62 = vmatprep.subr.mxu0 0.0
    %63 = vmatpush1.msra.mxu0 0.0
    %64 = vmatprep.subr.mxu0 0.0
    %65 = vmatpush1.msra.mxu0 0.0
    %66 = vmatprep.subr.mxu0 0.0
    %67 = vmatpush1.msra.mxu0 0.0
    %68 = vmatprep.subr.mxu0 0.0
    %69 = vmatpush1.msra.mxu0 0.0
    %70 = vmatprep.subr.mxu0 0.0
    %71 = vmatpush1.msra.mxu0 0.0
    %72 = vmatprep.subr.mxu0 0.0
    %73 = vmatpush1.msra.mxu0 0.0
    %74 = vmatprep.subr.mxu0 0.0
    %75 = vmatpush1.msra.mxu0 0.0
    %76 = vmatprep.subr.mxu0 0.0
    %77 = vmatpush1.msra.mxu0 0.0
    %78 = vmatprep.subr.mxu0 0.0
    %79 = vmatpush1.msra.mxu0 0.0
    %80 = vmatprep.subr.mxu0 0.0
    %81 = vmatpush1.msra.mxu0 0.0
    %82 = vmatprep.subr.mxu0 0.0
    %83 = vmatpush1.msra.mxu0 0.0
    %84 = vmatprep.subr.mxu0 0.0
    %85 = vmatpush1.msra.mxu0 0.0
    %86 = vmatprep.subr.mxu0 0.0
    %87 = vmatpush1.msra.mxu0 0.0
    %88 = vmatprep.subr.mxu0 0.0
    %89 = vmatpush1.msra.mxu0 0.0
    %90 = vmatprep.subr.mxu0 0.0
    %91 = vmatpush1.msra.mxu0 0.0
    %92 = vmatprep.subr.mxu0 0.0
    %93 = vmatpush1.msra.mxu0 0.0
    %94 = vmatprep.subr.mxu0 0.0
    %95 = vmatpush1.msra.mxu0 0.0
    %96 = vmatprep.subr.mxu0 0.0
    %97 = vmatpush1.msra.mxu0 0.0
    %98 = vmatprep.mubr.f32.mxu0 0.0
    %99 = vmatmul.mubr.f32.gmra.mrb[0].mxu0 %v32
    %v100 = vpop.f32.mrb[0].mxu0
    %v101 = vadd.f32 %v28, %v100
    %v102 = vpop.f32.mrb[0].mxu0
    %103 = vdwg.mxu0
    %v104 = vmax.f32 %v101, 0.0
    %v105 = vld [vmem:[%s3] sm:$0xff]
    %v106 = vld [vmem:[%s3 + $0x8] sm:$0xff]
    %v107 = vld [vmem:[%s4] sm:$0x1]
    %v109 = vlaneseq
    %v110 = vshrl.u32 %v109, 7
    %v111 = vsub.s32 0, %v110
    %v112 = vrot.slane %v107, %v111
    %vm114 = vcmask 130048
    %v116 = vsel %vm114, %v104, 0
    %118 = vmatprep.subr.mxu0 0.0
    %119 = vmatpush1.msra.mxu0 %v105
    %120 = vmatprep.subr.mxu0 0.0
    %121 = vmatpush1.msra.mxu0 %v106
    %122 = vmatprep.subr.mxu0 0.0
    %123 = vmatpush1.msra.mxu0 0.0
    %124 = vmatprep.subr.mxu0 0.0
    %125 = vmatpush1.msra.mxu0 0.0
    %126 = vmatprep.subr.mxu0 0.0
    %127 = vmatpush1.msra.mxu0 0.0
    %128 = vmatprep.subr.mxu0 0.0
    %129 = vmatpush1.msra.mxu0 0.0
    %130 = vmatprep.subr.mxu0 0.0
    %131 = vmatpush1.msra.mxu0 0.0
    %132 = vmatprep.subr.mxu0 0.0
    %133 = vmatpush1.msra.mxu0 0.0
    %134 = vmatprep.subr.mxu0 0.0
    %135 = vmatpush1.msra.mxu0 0.0
    %136 = vmatprep.subr.mxu0 0.0
    %137 = vmatpush1.msra.mxu0 0.0
    %138 = vmatprep.subr.mxu0 0.0
    %139 = vmatpush1.msra.mxu0 0.0
    %140 = vmatprep.subr.mxu0 0.0
    %141 = vmatpush1.msra.mxu0 0.0
    %142 = vmatprep.subr.mxu0 0.0
    %143 = vmatpush1.msra.mxu0 0.0
    %144 = vmatprep.subr.mxu0 0.0
    %145 = vmatpush1.msra.mxu0 0.0
    %146 = vmatprep.subr.mxu0 0.0
    %147 = vmatpush1.msra.mxu0 0.0
    %148 = vmatprep.subr.mxu0 0.0
    %149 = vmatpush1.msra.mxu0 0.0
    %150 = vmatprep.subr.mxu0 0.0
    %151 = vmatpush1.msra.mxu0 0.0
    %152 = vmatprep.subr.mxu0 0.0
    %153 = vmatpush1.msra.mxu0 0.0
    %154 = vmatprep.subr.mxu0 0.0
    %155 = vmatpush1.msra.mxu0 0.0
    %156 = vmatprep.subr.mxu0 0.0
    %157 = vmatpush1.msra.mxu0 0.0
    %158 = vmatprep.subr.mxu0 0.0
    %159 = vmatpush1.msra.mxu0 0.0
    %160 = vmatprep.subr.mxu0 0.0
    %161 = vmatpush1.msra.mxu0 0.0
    %162 = vmatprep.subr.mxu0 0.0
    %163 = vmatpush1.msra.mxu0 0.0
    %164 = vmatprep.subr.mxu0 0.0
    %165 = vmatpush1.msra.mxu0 0.0
    %166 = vmatprep.subr.mxu0 0.0
    %167 = vmatpush1.msra.mxu0 0.0
    %168 = vmatprep.subr.mxu0 0.0
    %169 = vmatpush1.msra.mxu0 0.0
    %170 = vmatprep.subr.mxu0 0.0
    %171 = vmatpush1.msra.mxu0 0.0
    %172 = vmatprep.subr.mxu0 0.0
    %173 = vmatpush1.msra.mxu0 0.0
    %174 = vmatprep.subr.mxu0 0.0
    %175 = vmatpush1.msra.mxu0 0.0
    %176 = vmatprep.subr.mxu0 0.0
    %177 = vmatpush1.msra.mxu0 0.0
    %178 = vmatprep.subr.mxu0 0.0
    %179 = vmatpush1.msra.mxu0 0.0
    %180 = vmatprep.subr.mxu0 0.0
    %181 = vmatpush1.msra.mxu0 0.0
    %182 = vmatprep.mubr.f32.mxu0 0.0
    %183 = vmatmul.mubr.f32.gmra.mrb[0].mxu0 %v116
    %v184 = vpop.f32.mrb[0].mxu0
    %v185 = vadd.f32 %v112, %v184
    %v186 = vpop.f32.mrb[0].mxu0
    %187 = vdwg.mxu0
    %v188 = vsel %vm114, %v185, -inf
    %189 = vmax.xlane.f32.xlu0 %v188
    %v190 = vpop.xlane.xlu0 %189
    %v191 = vsub.f32 %v185, %v190
    %v192 = vmul.f32 %v191, 1.442695
    %v193 = vpow.pop %v192
    %v194 = vsel %vm114, %v193, 0.0
    %195 = vadd.xlane.f32.xlu0 %v194
    %v196 = vpop.xlane.xlu0 %195
    %v197 = vrcp.pop %v196
    %v198 = vmul.f32 %v193, %v197
    %199 = vst.msk [vmem:[#allocation2] sm:$0xff] %vm114, %v198
    // Predicated region
    $region22: #{receiver_4_forward.1} parent=1 // pred_check
      _
    $region23: #{receiver_4_forward.1} parent=1 // pred_check_branch
      %201 = sbr.rel (0) target = $region25
    $region24: #{receiver_4_forward.1} parent=1 // pred_region
      %s203 = ssub.s32 128, 128
      %204 = vsyncadd [#allocation3], %s203
      %s206 = sshll.u32 [#allocation2], 4
      %s207 = int_to_ptr.vmem [resolvable:$true] %s206
      %209 = dma.vmem_to_hbm [thread:$0]  %s207, 128, %s5, [#allocation3]
    $region25: #{receiver_4_forward.1} parent=1 // pred_fallthru
      _
    // Predicated region
    $region26: #{receiver_4_forward.1} parent=1 // pred_check
      _
    $region27: #{receiver_4_forward.1} parent=1 // pred_check_branch
      %211 = sbr.rel (0) target = $region29
    $region28: #{receiver_4_forward.1} parent=1 // pred_region
      %212 = dma.done [#allocation3], 128
    $region29: #{receiver_4_forward.1} parent=1 // pred_fallthru
      _
    %213 = vsyncpa [#allocation3], 1

</llo_original>
